<compile_context>
chip_gen: v7x
topology: tpu7x:2x2x1
jax: 0.10.0
libtpu: 0.0.40
codegen_flags: <defaults>
</compile_context>

<pallas_src>
import jax
import jax.numpy as jnp
from jax.experimental import pallas as pl
from jax.experimental.pallas import tpu as pltpu

BN_EPS = 1e-5
F_IN = 15      # tabular feature count of the PyTorch module
F_PAD = 128    # lane-aligned padded feature width


def _bn_relu_train(h, gamma, beta, inv_b):
    """BatchNorm1d (training, batch stats, biased var) fused with ReLU.

    One pass over h for the statistics, then a single per-element mul+add.
    """
    s = jnp.sum(h, axis=0, keepdims=True)            # [1, C]
    ss = jnp.sum(h * h, axis=0, keepdims=True)       # [1, C]
    mean = s * inv_b
    var = jnp.maximum(ss * inv_b - mean * mean, 0.0)  # clamp cancellation noise
    scale = gamma * jax.lax.rsqrt(var + BN_EPS)       # [1, C]
    shift = beta - mean * scale                       # [1, C]
    return jnp.maximum(h * scale + shift, 0.0)


def tab_net_kernel(x_ref, w1_ref, p1_ref, w2_ref, p2_ref, cls_ref, out_ref):
    x = x_ref[...]                    # [B, F_PAD] f32 (zero padded beyond col 15)
    inv_b = 1.0 / x.shape[0]          # static compile-time constant

    # ---- fc1: Linear(15->128) + BN + ReLU ----
    h1 = jnp.dot(x, w1_ref[...], preferred_element_type=jnp.float32) + p1_ref[0:1, :]
    h1 = _bn_relu_train(h1, p1_ref[1:2, :], p1_ref[2:3, :], inv_b)

    # ---- fc2: Linear(128->z) + BN + ReLU ----
    h2 = jnp.dot(h1, w2_ref[...], preferred_element_type=jnp.float32) + p2_ref[0:1, :]
    h2 = _bn_relu_train(h2, p2_ref[1:2, :], p2_ref[2:3, :], inv_b)

    # ---- classifier: Linear(z->1) + Sigmoid, as VPU mul + lane reduce ----
    w3_row = cls_ref[0:1, :]          # [1, z]
    b3 = cls_ref[1:2, 0:1]            # [1, 1]
    logits = jnp.sum(h2 * w3_row, axis=-1, keepdims=True) + b3   # [B, 1]
    out_ref[...] = jax.nn.sigmoid(logits)


@jax.jit
def tab_net_forward(img, x, params):
    # `img` is unused by the reference forward; accepted for signature parity.
    del img
    B = x.shape[0]
    z = params["w2"].shape[1]
    assert params["w3"].shape[1] == 1, "kernel specializes classifier to TAB_FTS=1"

    # Zero-pad feature axis to a lane-aligned width (math unchanged).
    x_p = jnp.zeros((B, F_PAD), jnp.float32).at[:, :F_IN].set(x)
    w1_p = jnp.zeros((F_PAD, 128), jnp.float32).at[:F_IN, :].set(params["w1"])

    # Pack small per-layer vectors to cut operand count (11 -> 6).
    p1 = jnp.concatenate([params["b1"], params["g1"], params["be1"]], axis=0)  # [3,128]
    p2 = jnp.concatenate([params["b2"], params["g2"], params["be2"]], axis=0)  # [3,z]
    cls = jnp.concatenate(
        [params["w3"].T, jnp.broadcast_to(params["b3"][0, 0], (1, z))], axis=0
    )  # [2, z]: row 0 = classifier weights, row 1 = bias (broadcast)

    vmem = pl.BlockSpec(memory_space=pltpu.MemorySpace.VMEM)
    return pl.pallas_call(
        tab_net_kernel,
        out_shape=jax.ShapeDtypeStruct((B, 1), jnp.float32),
        in_specs=[vmem] * 6,
        out_specs=vmem,
        compiler_params=pltpu.CompilerParams(vmem_limit_bytes=32 * 1024 * 1024),
    )(x_p, w1_p, p1, params["w2"], p2, cls)


def init_params(key, z=64, tab_fts=1):
    ks = jax.random.split(key, 6)

    def lin(k, fan_in, fan_out):
        bound = 1.0 / jnp.sqrt(fan_in)
        kw, kb = jax.random.split(k)
        w = jax.random.uniform(kw, (fan_in, fan_out), jnp.float32, -bound, bound)
        b = jax.random.uniform(kb, (1, fan_out), jnp.float32, -bound, bound)
        return w, b

    w1, b1 = lin(ks[0], 15, 128)
    w2, b2 = lin(ks[1], 128, z)
    w3, b3 = lin(ks[2], z, tab_fts)
    # BatchNorm affine params: perturb from PyTorch defaults (gamma=1, beta=0)
    # so the affine path is actually exercised.
    g1 = 1.0 + 0.01 * jax.random.normal(ks[3], (1, 128), jnp.float32)
    be1 = 0.01 * jax.random.normal(ks[4], (1, 128), jnp.float32)
    g2 = 1.0 + 0.01 * jax.random.normal(ks[5], (1, z), jnp.float32)
    be2 = jnp.zeros((1, z), jnp.float32)
    return {
        "w1": w1, "b1": b1, "g1": g1, "be1": be1,
        "w2": w2, "b2": b2, "g2": g2, "be2": be2,
        "w3": w3, "b3": b3,
    }


def reference_forward(img, x, params):
    # Pure-JAX reference of the module's training-mode forward (classic two-pass BN).
    del img

    def bn(h, gamma, beta):
        mean = jnp.mean(h, axis=0, keepdims=True)
        var = jnp.mean((h - mean) ** 2, axis=0, keepdims=True)
        return (h - mean) * jax.lax.rsqrt(var + BN_EPS) * gamma + beta

    h1 = jnp.maximum(bn(x @ params["w1"] + params["b1"], params["g1"], params["be1"]), 0.0)
    h2 = jnp.maximum(bn(h1 @ params["w2"] + params["b2"], params["g2"], params["be2"]), 0.0)
    return jax.nn.sigmoid(h2 @ params["w3"] + params["b3"])


if __name__ == "__main__":
    key = jax.random.PRNGKey(0)
    k_img, k_x, k_p = jax.random.split(key, 3)

    B, Z, TAB_FTS = 8, 64, 1
    img = jax.random.normal(k_img, (B, 3, 16, 16), jnp.float32)  # ignored by forward
    x = jax.random.normal(k_x, (B, 15), jnp.float32)
    params = init_params(k_p, z=Z, tab_fts=TAB_FTS)

    out = tab_net_forward(img, x, params)
    out = jax.block_until_ready(out)

    ref = reference_forward(img, x, params)
    assert out.shape == (B, TAB_FTS)
    assert jnp.allclose(out, ref, atol=2e-5, rtol=2e-5), "mismatch vs reference"

    print("KERNEL_OK")
</pallas_src>

<mosaic_0001>
module attributes {stable_mosaic.version = 11 : i64} {
  func.func @tab_net_kernel(%arg0: memref<8x128xf32, #tpu.memory_space<vmem>>, %arg1: memref<128x128xf32, #tpu.memory_space<vmem>>, %arg2: memref<3x128xf32, #tpu.memory_space<vmem>>, %arg3: memref<128x64xf32, #tpu.memory_space<vmem>>, %arg4: memref<3x64xf32, #tpu.memory_space<vmem>>, %arg5: memref<2x64xf32, #tpu.memory_space<vmem>>, %arg6: memref<8x1xf32, #tpu.memory_space<vmem>>) attributes {dimension_semantics = [], scalar_prefetch = 0 : i64, scratch_operands = 0 : i64, tpu.core_type = #tpu.core_type<tc>} {
    %c0 = arith.constant 0 : index
    %c0_0 = arith.constant 0 : index
    %0 = vector.load %arg0[%c0, %c0_0] : memref<8x128xf32, #tpu.memory_space<vmem>>, vector<8x128xf32>
    %c0_1 = arith.constant 0 : index
    %c0_2 = arith.constant 0 : index
    %1 = vector.load %arg1[%c0_1, %c0_2] : memref<128x128xf32, #tpu.memory_space<vmem>>, vector<128x128xf32>
    %cst = arith.constant dense<0.000000e+00> : vector<8x128xf32>
    %2 = tpu.matmul %0, %1, %cst {dimension_numbers = #tpu.dot_dimension_numbers<[1], [0], [0], [1], [0, 0, 1, 1], [], []>} : vector<8x128xf32>, vector<128x128xf32>, vector<8x128xf32> -> vector<8x128xf32>
    %c0_3 = arith.constant 0 : index
    %c0_4 = arith.constant 0 : index
    %3 = vector.load %arg2[%c0_3, %c0_4] : memref<3x128xf32, #tpu.memory_space<vmem>>, vector<1x128xf32>
    %4 = vector.broadcast %3 : vector<1x128xf32> to vector<8x128xf32>
    %5 = arith.addf %2, %4 : vector<8x128xf32>
    %c1 = arith.constant 1 : index
    %c0_5 = arith.constant 0 : index
    %6 = vector.load %arg2[%c1, %c0_5] : memref<3x128xf32, #tpu.memory_space<vmem>>, vector<1x128xf32>
    %c2 = arith.constant 2 : index
    %c0_6 = arith.constant 0 : index
    %7 = vector.load %arg2[%c2, %c0_6] : memref<3x128xf32, #tpu.memory_space<vmem>>, vector<1x128xf32>
    %cst_7 = arith.constant dense<0.000000e+00> : vector<128xf32>
    %8 = vector.multi_reduction <add>, %5, %cst_7 [0] : vector<8x128xf32> to vector<128xf32>
    %9 = vector.shape_cast %8 : vector<128xf32> to vector<1x128xf32>
    %10 = arith.mulf %5, %5 : vector<8x128xf32>
    %cst_8 = arith.constant dense<0.000000e+00> : vector<128xf32>
    %11 = vector.multi_reduction <add>, %10, %cst_8 [0] : vector<8x128xf32> to vector<128xf32>
    %12 = vector.shape_cast %11 : vector<128xf32> to vector<1x128xf32>
    %cst_9 = arith.constant 1.250000e-01 : f32
    %13 = vector.broadcast %cst_9 : f32 to vector<1x128xf32>
    %14 = arith.mulf %9, %13 : vector<1x128xf32>
    %cst_10 = arith.constant 1.250000e-01 : f32
    %15 = vector.broadcast %cst_10 : f32 to vector<1x128xf32>
    %16 = arith.mulf %12, %15 : vector<1x128xf32>
    %17 = arith.mulf %14, %14 : vector<1x128xf32>
    %18 = arith.subf %16, %17 : vector<1x128xf32>
    %cst_11 = arith.constant 0.000000e+00 : f32
    %19 = vector.broadcast %cst_11 : f32 to vector<1x128xf32>
    %20 = arith.maximumf %18, %19 : vector<1x128xf32>
    %cst_12 = arith.constant 9.99999974E-6 : f32
    %21 = vector.broadcast %cst_12 : f32 to vector<1x128xf32>
    %22 = arith.addf %20, %21 : vector<1x128xf32>
    %23 = math.rsqrt %22 : vector<1x128xf32>
    %24 = arith.mulf %6, %23 : vector<1x128xf32>
    %25 = arith.mulf %14, %24 : vector<1x128xf32>
    %26 = arith.subf %7, %25 : vector<1x128xf32>
    %27 = vector.broadcast %24 : vector<1x128xf32> to vector<8x128xf32>
    %28 = arith.mulf %5, %27 : vector<8x128xf32>
    %29 = vector.broadcast %26 : vector<1x128xf32> to vector<8x128xf32>
    %30 = arith.addf %28, %29 : vector<8x128xf32>
    %cst_13 = arith.constant 0.000000e+00 : f32
    %31 = vector.broadcast %cst_13 : f32 to vector<8x128xf32>
    %32 = arith.maximumf %30, %31 : vector<8x128xf32>
    %c0_14 = arith.constant 0 : index
    %c0_15 = arith.constant 0 : index
    %33 = vector.load %arg3[%c0_14, %c0_15] : memref<128x64xf32, #tpu.memory_space<vmem>>, vector<128x64xf32>
    %cst_16 = arith.constant dense<0.000000e+00> : vector<8x64xf32>
    %34 = tpu.matmul %32, %33, %cst_16 {dimension_numbers = #tpu.dot_dimension_numbers<[1], [0], [0], [1], [0, 0, 1, 1], [], []>} : vector<8x128xf32>, vector<128x64xf32>, vector<8x64xf32> -> vector<8x64xf32>
    %c0_17 = arith.constant 0 : index
    %c0_18 = arith.constant 0 : index
    %35 = vector.load %arg4[%c0_17, %c0_18] : memref<3x64xf32, #tpu.memory_space<vmem>>, vector<1x64xf32>
    %36 = vector.broadcast %35 : vector<1x64xf32> to vector<8x64xf32>
    %37 = arith.addf %34, %36 : vector<8x64xf32>
    %c1_19 = arith.constant 1 : index
    %c0_20 = arith.constant 0 : index
    %38 = vector.load %arg4[%c1_19, %c0_20] : memref<3x64xf32, #tpu.memory_space<vmem>>, vector<1x64xf32>
    %c2_21 = arith.constant 2 : index
    %c0_22 = arith.constant 0 : index
    %39 = vector.load %arg4[%c2_21, %c0_22] : memref<3x64xf32, #tpu.memory_space<vmem>>, vector<1x64xf32>
    %cst_23 = arith.constant dense<0.000000e+00> : vector<64xf32>
    %40 = vector.multi_reduction <add>, %37, %cst_23 [0] : vector<8x64xf32> to vector<64xf32>
    %41 = vector.shape_cast %40 : vector<64xf32> to vector<1x64xf32>
    %42 = arith.mulf %37, %37 : vector<8x64xf32>
    %cst_24 = arith.constant dense<0.000000e+00> : vector<64xf32>
    %43 = vector.multi_reduction <add>, %42, %cst_24 [0] : vector<8x64xf32> to vector<64xf32>
    %44 = vector.shape_cast %43 : vector<64xf32> to vector<1x64xf32>
    %cst_25 = arith.constant 1.250000e-01 : f32
    %45 = vector.broadcast %cst_25 : f32 to vector<1x64xf32>
    %46 = arith.mulf %41, %45 : vector<1x64xf32>
    %cst_26 = arith.constant 1.250000e-01 : f32
    %47 = vector.broadcast %cst_26 : f32 to vector<1x64xf32>
    %48 = arith.mulf %44, %47 : vector<1x64xf32>
    %49 = arith.mulf %46, %46 : vector<1x64xf32>
    %50 = arith.subf %48, %49 : vector<1x64xf32>
    %cst_27 = arith.constant 0.000000e+00 : f32
    %51 = vector.broadcast %cst_27 : f32 to vector<1x64xf32>
    %52 = arith.maximumf %50, %51 : vector<1x64xf32>
    %cst_28 = arith.constant 9.99999974E-6 : f32
    %53 = vector.broadcast %cst_28 : f32 to vector<1x64xf32>
    %54 = arith.addf %52, %53 : vector<1x64xf32>
    %55 = math.rsqrt %54 : vector<1x64xf32>
    %56 = arith.mulf %38, %55 : vector<1x64xf32>
    %57 = arith.mulf %46, %56 : vector<1x64xf32>
    %58 = arith.subf %39, %57 : vector<1x64xf32>
    %59 = vector.broadcast %56 : vector<1x64xf32> to vector<8x64xf32>
    %60 = arith.mulf %37, %59 : vector<8x64xf32>
    %61 = vector.broadcast %58 : vector<1x64xf32> to vector<8x64xf32>
    %62 = arith.addf %60, %61 : vector<8x64xf32>
    %cst_29 = arith.constant 0.000000e+00 : f32
    %63 = vector.broadcast %cst_29 : f32 to vector<8x64xf32>
    %64 = arith.maximumf %62, %63 : vector<8x64xf32>
    %c0_30 = arith.constant 0 : index
    %c0_31 = arith.constant 0 : index
    %65 = vector.load %arg5[%c0_30, %c0_31] : memref<2x64xf32, #tpu.memory_space<vmem>>, vector<1x64xf32>
    %c1_32 = arith.constant 1 : index
    %c0_33 = arith.constant 0 : index
    %66 = vector.load %arg5[%c1_32, %c0_33] : memref<2x64xf32, #tpu.memory_space<vmem>>, vector<1x1xf32>
    %67 = vector.broadcast %65 : vector<1x64xf32> to vector<8x64xf32>
    %68 = arith.mulf %64, %67 : vector<8x64xf32>
    %cst_34 = arith.constant dense<0.000000e+00> : vector<8xf32>
    %69 = vector.multi_reduction <add>, %68, %cst_34 [1] : vector<8x64xf32> to vector<8xf32>
    %70 = vector.shape_cast %69 : vector<8xf32> to vector<8x1xf32>
    %71 = vector.broadcast %66 : vector<1x1xf32> to vector<8x1xf32>
    %72 = arith.addf %70, %71 : vector<8x1xf32>
    %73 = arith.negf %72 : vector<8x1xf32>
    %74 = math.exp %73 : vector<8x1xf32>
    %cst_35 = arith.constant 1.000000e+00 : f32
    %75 = vector.broadcast %cst_35 : f32 to vector<8x1xf32>
    %76 = arith.addf %75, %74 : vector<8x1xf32>
    %77 = arith.divf %75, %76 : vector<8x1xf32>
    %c0_36 = arith.constant 0 : index
    %c0_37 = arith.constant 0 : index
    %78 = vector.load %arg6[%c0_36, %c0_37] : memref<8x1xf32, #tpu.memory_space<vmem>>, vector<8x1xf32>
    tpu.vector_store %arg6[%c0_36, %c0_37], %77 {strides = array<i32>} : memref<8x1xf32, #tpu.memory_space<vmem>>, vector<8x1xf32>,
    return
  }
}

</mosaic_0001>

<llo_original>
// kernel: tab_net_forward.1
$region0: #{tab_net_forward.1}
  #allocation0 [shape = 'u32[]', space=smem, size = 0x4, offset = 0x4, fixed_abs, tag = 'smem constant byte address 0x4 - core index']
  #allocation1 [shape = 'u32[144,128]{1,0:T(1,128)}', space=vmem, size = 0x12000, scoped, tag = 'internal scratch']
  %s0 = inlined_call_operand.vmem [shape: f32[8,128], index: 0, kind: input, shape index: {}]
  %s1 = inlined_call_operand.vmem [shape: f32[128,128], index: 1, kind: input, shape index: {}]
  %s2 = inlined_call_operand.vmem [shape: f32[3,128], index: 2, kind: input, shape index: {}]
  %s3 = inlined_call_operand.vmem [shape: f32[128,64], index: 3, kind: input, shape index: {}]
  %s4 = inlined_call_operand.vmem [shape: f32[3,64], index: 4, kind: input, shape index: {}]
  %s5 = inlined_call_operand.vmem [shape: f32[2,64], index: 5, kind: input, shape index: {}]
  %s6 = inlined_call_operand.vmem [shape: f32[8,1], index: 6, kind: output, shape index: {}]
  %s7 = sld [smem:[#allocation0]]
  $region34: #{tab_net_forward.1} parent=0
    _
  %s9 = ssub.s32 1, %s7
  %s10 = scalar_select 0, %s9, %s7
  // Predicated region
  $region2: #{tab_net_forward.1} parent=0 // pred_check
    _
  $region3: #{tab_net_forward.1} parent=0 // pred_check_branch
    %12 = sbr.rel (0) target = $region5
  $region4: #{tab_net_forward.1} parent=0 // pred_region
    _
  $region5: #{tab_net_forward.1} parent=0 // pred_fallthru
    _
  // Predicated region
  $region6: #{tab_net_forward.1} parent=0 // pred_check
    _
  $region7: #{tab_net_forward.1} parent=0 // pred_check_branch
    %14 = sbr.rel (0) target = $region9
  $region8: #{tab_net_forward.1} parent=0 // pred_region
    _
  $region9: #{tab_net_forward.1} parent=0 // pred_fallthru
    _
  // Predicated region
  $region10: #{tab_net_forward.1} parent=0 // pred_check
    _
  $region11: #{tab_net_forward.1} parent=0 // pred_check_branch
    %16 = sbr.rel (0) target = $region13
  $region12: #{tab_net_forward.1} parent=0 // pred_region
    _
  $region13: #{tab_net_forward.1} parent=0 // pred_fallthru
    _
  // Predicated region
  $region14: #{tab_net_forward.1} parent=0 // pred_check
    _
  $region15: #{tab_net_forward.1} parent=0 // pred_check_branch
    %18 = sbr.rel (0) target = $region17
  $region16: #{tab_net_forward.1} parent=0 // pred_region
    _
  $region17: #{tab_net_forward.1} parent=0 // pred_fallthru
    _
  // Predicated region
  $region18: #{tab_net_forward.1} parent=0 // pred_check
    _
  $region19: #{tab_net_forward.1} parent=0 // pred_check_branch
    %20 = sbr.rel (0) target = $region21
  $region20: #{tab_net_forward.1} parent=0 // pred_region
    _
  $region21: #{tab_net_forward.1} parent=0 // pred_fallthru
    _
  // Predicated region
  $region22: #{tab_net_forward.1} parent=0 // pred_check
    _
  $region23: #{tab_net_forward.1} parent=0 // pred_check_branch
    %22 = sbr.rel (0) target = $region25
  $region24: #{tab_net_forward.1} parent=0 // pred_region
    _
  $region25: #{tab_net_forward.1} parent=0 // pred_fallthru
    _
  %v23 = vld [vmem:[%s0] sm:$0xff]
  %v24 = vld [vmem:[%s1] sm:$0xff]
  %v25 = vld [vmem:[%s1 + $0x8] sm:$0xff]
  %v26 = vld [vmem:[%s1 + $0x10] sm:$0xff]
  %v27 = vld [vmem:[%s1 + $0x18] sm:$0xff]
  %v28 = vld [vmem:[%s1 + $0x20] sm:$0xff]
  %v29 = vld [vmem:[%s1 + $0x28] sm:$0xff]
  %v30 = vld [vmem:[%s1 + $0x30] sm:$0xff]
  %v31 = vld [vmem:[%s1 + $0x38] sm:$0xff]
  %v32 = vld [vmem:[%s1 + $0x40] sm:$0xff]
  %v33 = vld [vmem:[%s1 + $0x48] sm:$0xff]
  %v34 = vld [vmem:[%s1 + $0x50] sm:$0xff]
  %v35 = vld [vmem:[%s1 + $0x58] sm:$0xff]
  %v36 = vld [vmem:[%s1 + $0x60] sm:$0xff]
  %v37 = vld [vmem:[%s1 + $0x68] sm:$0xff]
  %v38 = vld [vmem:[%s1 + $0x70] sm:$0xff]
  %v39 = vld [vmem:[%s1 + $0x78] sm:$0xff]
  %v40 = vld [vmem:[%s2] sm:$0x1]
  %v41 = vlaneseq
  %v42 = vshrl.u32 %v41, 7
  %v43 = vsub.s32 0, %v42
  %v44 = vrot.slane %v40, %v43
  %45 = vmatprep.subr.mxu0 0.0
  %46 = vmatpush1.msra.mxu0 %v24
  %47 = vmatprep.subr.mxu0 0.0
  %48 = vmatpush1.msra.mxu0 %v25
  %49 = vmatprep.subr.mxu0 0.0
  %50 = vmatpush1.msra.mxu0 %v26
  %51 = vmatprep.subr.mxu0 0.0
  %52 = vmatpush1.msra.mxu0 %v27
  %53 = vmatprep.subr.mxu0 0.0
  %54 = vmatpush1.msra.mxu0 %v28
  %55 = vmatprep.subr.mxu0 0.0
  %56 = vmatpush1.msra.mxu0 %v29
  %57 = vmatprep.subr.mxu0 0.0
  %58 = vmatpush1.msra.mxu0 %v30
  %59 = vmatprep.subr.mxu0 0.0
  %60 = vmatpush1.msra.mxu0 %v31
  %61 = vmatprep.subr.mxu0 0.0
  %62 = vmatpush1.msra.mxu0 %v32
  %63 = vmatprep.subr.mxu0 0.0
  %64 = vmatpush1.msra.mxu0 %v33
  %65 = vmatprep.subr.mxu0 0.0
  %66 = vmatpush1.msra.mxu0 %v34
  %67 = vmatprep.subr.mxu0 0.0
  %68 = vmatpush1.msra.mxu0 %v35
  %69 = vmatprep.subr.mxu0 0.0
  %70 = vmatpush1.msra.mxu0 %v36
  %71 = vmatprep.subr.mxu0 0.0
  %72 = vmatpush1.msra.mxu0 %v37
  %73 = vmatprep.subr.mxu0 0.0
  %74 = vmatpush1.msra.mxu0 %v38
  %75 = vmatprep.subr.mxu0 0.0
  %76 = vmatpush1.msra.mxu0 %v39
  %77 = vmatprep.subr.mxu0 0.0
  %78 = vmatpush1.msra.mxu0 0.0
  %79 = vmatprep.subr.mxu0 0.0
  %80 = vmatpush1.msra.mxu0 0.0
  %81 = vmatprep.subr.mxu0 0.0
  %82 = vmatpush1.msra.mxu0 0.0
  %83 = vmatprep.subr.mxu0 0.0
  %84 = vmatpush1.msra.mxu0 0.0
  %85 = vmatprep.subr.mxu0 0.0
  %86 = vmatpush1.msra.mxu0 0.0
  %87 = vmatprep.subr.mxu0 0.0
  %88 = vmatpush1.msra.mxu0 0.0
  %89 = vmatprep.subr.mxu0 0.0
  %90 = vmatpush1.msra.mxu0 0.0
  %91 = vmatprep.subr.mxu0 0.0
  %92 = vmatpush1.msra.mxu0 0.0
  %93 = vmatprep.subr.mxu0 0.0
  %94 = vmatpush1.msra.mxu0 0.0
  %95 = vmatprep.subr.mxu0 0.0
  %96 = vmatpush1.msra.mxu0 0.0
  %97 = vmatprep.subr.mxu0 0.0
  %98 = vmatpush1.msra.mxu0 0.0
  %99 = vmatprep.subr.mxu0 0.0
  %100 = vmatpush1.msra.mxu0 0.0
  %101 = vmatprep.subr.mxu0 0.0
  %102 = vmatpush1.msra.mxu0 0.0
  %103 = vmatprep.subr.mxu0 0.0
  %104 = vmatpush1.msra.mxu0 0.0
  %105 = vmatprep.subr.mxu0 0.0
  %106 = vmatpush1.msra.mxu0 0.0
  %107 = vmatprep.subr.mxu0 0.0
  %108 = vmatpush1.msra.mxu0 0.0
  %109 = vmatprep.mubr.f32.mxu0 0.0
  %110 = vmatmul.mubr.f32.gmra.mrb[0].mxu0 %v23
  %v111 = vpop.f32.mrb[0].mxu0
  %v112 = vadd.f32 %v44, %v111
  %v113 = vpop.f32.mrb[0].mxu0
  %114 = vdwg.mxu0
  %v115 = vld [vmem:[%s2 + $0x1] sm:$0x1]
  %v116 = vld [vmem:[%s2 + $0x2] sm:$0x1]
  %v117 = vrot.slane %v112, 4
  %v118 = vadd.f32 %v112, %v117
  %v119 = vrot.slane %v118, 2
  %v120 = vadd.f32 %v118, %v119
  %v121 = vrot.slane %v120, 1
  %v122 = vadd.f32 %v120, %v121
  %v123 = vmul.f32 %v112, %v112
  %v124 = vrot.slane %v123, 4
  %v125 = vadd.f32 %v123, %v124
  %v126 = vrot.slane %v125, 2
  %v127 = vadd.f32 %v125, %v126
  %v128 = vrot.slane %v127, 1
  %v129 = vadd.f32 %v127, %v128
  %v130 = vmul.f32 %v122, 0.125
  %v131 = vmul.f32 %v129, 0.125
  %v132 = vmul.f32 %v130, %v130
  %v133 = vsub.f32 %v131, %v132
  %v134 = vmax.f32 %v133, 0.0
  %v135 = vadd.f32 %v134, 1e-05
  %v136 = vrsqrt.pop %v135
  %v137 = vmul.f32 %v115, %v136
  %v138 = vmul.f32 %v130, %v137
  %v139 = vsub.f32 %v116, %v138
  %v140 = vlaneseq
  %v141 = vshrl.u32 %v140, 7
  %v142 = vsub.s32 0, %v141
  %v143 = vrot.slane %v137, %v142
  %v144 = vmul.f32 %v112, %v143
  %v145 = vlaneseq
  %v146 = vshrl.u32 %v145, 7
  %v147 = vsub.s32 0, %v146
  %v148 = vrot.slane %v139, %v147
  %v149 = vadd.f32 %v144, %v148
  %v150 = vmax.f32 %v149, 0.0
  %v151 = vld [vmem:[%s3] sm:$0xff]
  %v152 = vld [vmem:[%s3 + $0x8] sm:$0xff]
  %v153 = vld [vmem:[%s3 + $0x10] sm:$0xff]
  %v154 = vld [vmem:[%s3 + $0x18] sm:$0xff]
  %v155 = vld [vmem:[%s3 + $0x20] sm:$0xff]
  %v156 = vld [vmem:[%s3 + $0x28] sm:$0xff]
  %v157 = vld [vmem:[%s3 + $0x30] sm:$0xff]
  %v158 = vld [vmem:[%s3 + $0x38] sm:$0xff]
  %v159 = vld [vmem:[%s3 + $0x40] sm:$0xff]
  %v160 = vld [vmem:[%s3 + $0x48] sm:$0xff]
  %v161 = vld [vmem:[%s3 + $0x50] sm:$0xff]
  %v162 = vld [vmem:[%s3 + $0x58] sm:$0xff]
  %v163 = vld [vmem:[%s3 + $0x60] sm:$0xff]
  %v164 = vld [vmem:[%s3 + $0x68] sm:$0xff]
  %v165 = vld [vmem:[%s3 + $0x70] sm:$0xff]
  %v166 = vld [vmem:[%s3 + $0x78] sm:$0xff]
  %v167 = vld [vmem:[%s4] sm:$0x1]
  %v168 = vlaneseq
  %v169 = vshrl.u32 %v168, 7
  %v170 = vsub.s32 0, %v169
  %v171 = vrot.slane %v167, %v170
  %172 = vmatprep.subr.mxu0 0.0
  %173 = vmatpush1.msra.mxu0 %v151
  %174 = vmatprep.subr.mxu0 0.0
  %175 = vmatpush1.msra.mxu0 %v152
  %176 = vmatprep.subr.mxu0 0.0
  %177 = vmatpush1.msra.mxu0 %v153
  %178 = vmatprep.subr.mxu0 0.0
  %179 = vmatpush1.msra.mxu0 %v154
  %180 = vmatprep.subr.mxu0 0.0
  %181 = vmatpush1.msra.mxu0 %v155
  %182 = vmatprep.subr.mxu0 0.0
  %183 = vmatpush1.msra.mxu0 %v156
  %184 = vmatprep.subr.mxu0 0.0
  %185 = vmatpush1.msra.mxu0 %v157
  %186 = vmatprep.subr.mxu0 0.0
  %187 = vmatpush1.msra.mxu0 %v158
  %188 = vmatprep.subr.mxu0 0.0
  %189 = vmatpush1.msra.mxu0 %v159
  %190 = vmatprep.subr.mxu0 0.0
  %191 = vmatpush1.msra.mxu0 %v160
  %192 = vmatprep.subr.mxu0 0.0
  %193 = vmatpush1.msra.mxu0 %v161
  %194 = vmatprep.subr.mxu0 0.0
  %195 = vmatpush1.msra.mxu0 %v162
  %196 = vmatprep.subr.mxu0 0.0
  %197 = vmatpush1.msra.mxu0 %v163
  %198 = vmatprep.subr.mxu0 0.0
  %199 = vmatpush1.msra.mxu0 %v164
  %200 = vmatprep.subr.mxu0 0.0
  %201 = vmatpush1.msra.mxu0 %v165
  %202 = vmatprep.subr.mxu0 0.0
  %203 = vmatpush1.msra.mxu0 %v166
  %204 = vmatprep.subr.mxu0 0.0
  %205 = vmatpush1.msra.mxu0 0.0
  %206 = vmatprep.subr.mxu0 0.0
  %207 = vmatpush1.msra.mxu0 0.0
  %208 = vmatprep.subr.mxu0 0.0
  %209 = vmatpush1.msra.mxu0 0.0
  %210 = vmatprep.subr.mxu0 0.0
  %211 = vmatpush1.msra.mxu0 0.0
  %212 = vmatprep.subr.mxu0 0.0
  %213 = vmatpush1.msra.mxu0 0.0
  %214 = vmatprep.subr.mxu0 0.0
  %215 = vmatpush1.msra.mxu0 0.0
  %216 = vmatprep.subr.mxu0 0.0
  %217 = vmatpush1.msra.mxu0 0.0
  %218 = vmatprep.subr.mxu0 0.0
  %219 = vmatpush1.msra.mxu0 0.0
  %220 = vmatprep.subr.mxu0 0.0
  %221 = vmatpush1.msra.mxu0 0.0
  %222 = vmatprep.subr.mxu0 0.0
  %223 = vmatpush1.msra.mxu0 0.0
  %224 = vmatprep.subr.mxu0 0.0
  %225 = vmatpush1.msra.mxu0 0.0
  %226 = vmatprep.subr.mxu0 0.0
  %227 = vmatpush1.msra.mxu0 0.0
  %228 = vmatprep.subr.mxu0 0.0
  %229 = vmatpush1.msra.mxu0 0.0
  %230 = vmatprep.subr.mxu0 0.0
  %231 = vmatpush1.msra.mxu0 0.0
  %232 = vmatprep.subr.mxu0 0.0
  %233 = vmatpush1.msra.mxu0 0.0
  %234 = vmatprep.subr.mxu0 0.0
  %235 = vmatpush1.msra.mxu0 0.0
  %236 = vmatprep.mubr.f32.mxu0 0.0
  %237 = vmatmul.mubr.f32.gmra.mrb[0].mxu0 %v150
  %v238 = vpop.f32.mrb[0].mxu0
  %v239 = vadd.f32 %v171, %v238
  %v240 = vpop.f32.mrb[0].mxu0
  %241 = vdwg.mxu0
  %v242 = vld [vmem:[%s4 + $0x1] sm:$0x1]
  %v243 = vld [vmem:[%s4 + $0x2] sm:$0x1]
  %vm244 = vcmask 523264
  %v245 = vsel %vm244, %v239, 0.0
  %v246 = vrot.slane %v245, 4
  %v247 = vadd.f32 %v245, %v246
  %v248 = vrot.slane %v247, 2
  %v249 = vadd.f32 %v247, %v248
  %v250 = vrot.slane %v249, 1
  %v251 = vadd.f32 %v249, %v250
  %v252 = vmul.f32 %v239, %v239
  %v253 = vsel %vm244, %v252, 0.0
  %v254 = vrot.slane %v253, 4
  %v255 = vadd.f32 %v253, %v254
  %v256 = vrot.slane %v255, 2
  %v257 = vadd.f32 %v255, %v256
  %v258 = vrot.slane %v257, 1
  %v259 = vadd.f32 %v257, %v258
  %v260 = vmul.f32 %v251, 0.125
  %v261 = vmul.f32 %v259, 0.125
  %v262 = vmul.f32 %v260, %v260
  %v263 = vsub.f32 %v261, %v262
  %v264 = vmax.f32 %v263, 0.0
  %v265 = vadd.f32 %v264, 1e-05
  %v266 = vrsqrt.pop %v265
  %v267 = vmul.f32 %v242, %v266
  %v268 = vmul.f32 %v260, %v267
  %v269 = vsub.f32 %v243, %v268
  %v270 = vlaneseq
  %v271 = vshrl.u32 %v270, 7
  %v272 = vsub.s32 0, %v271
  %v273 = vrot.slane %v267, %v272
  %v274 = vmul.f32 %v239, %v273
  %v275 = vlaneseq
  %v276 = vshrl.u32 %v275, 7
  %v277 = vsub.s32 0, %v276
  %v278 = vrot.slane %v269, %v277
  %v279 = vadd.f32 %v274, %v278
  %v280 = vmax.f32 %v279, 0.0
  %v281 = vld [vmem:[%s5] sm:$0x1]
  %v282 = vld [vmem:[%s5 + $0x1] sm:$0x1]
  %v283 = vlaneseq
  %v284 = vshrl.u32 %v283, 7
  %v285 = vsub.s32 0, %v284
  %v286 = vrot.slane %v281, %v285
  %v287 = vmul.f32 %v280, %v286
  %v288 = vsel %vm244, %v287, 0.0
  %289 = vadd.xlane.f32.xlu0 %v288
  %v290 = vpop.xlane.xlu0 %289
  %v291 = vlaneseq
  %v292 = vshrl.u32 %v291, 7
  %v293 = vsub.s32 0, %v292
  %v294 = vrot.slane %v282, %v293
  %v295 = vadd.f32 %v290, %v294
  %v296 = vxor.u32 %v295, 2147483648
  %v297 = vmul.f32 %v296, 1.442695
  %v298 = vpow.pop %v297
  %v299 = vadd.f32 %v298, 1.0
  %v300 = vrcp.pop %v299
  %v301 = vmul.f32 1.0, %v300
  %vm302 = vcmask 7168
  %303 = vst.msk [vmem:[%s6] sm:$0xff] %vm302, %v301
  // Predicated region
  $region26: #{tab_net_forward.1} parent=0 // pred_check
    _
  $region27: #{tab_net_forward.1} parent=0 // pred_check_branch
    %305 = sbr.rel (0) target = $region29
  $region28: #{tab_net_forward.1} parent=0 // pred_region
    _
  $region29: #{tab_net_forward.1} parent=0 // pred_fallthru
    _
  // Predicated region
  $region30: #{tab_net_forward.1} parent=0 // pred_check
    _
  $region31: #{tab_net_forward.1} parent=0 // pred_check_branch
    %307 = sbr.rel (0) target = $region33
  $region32: #{tab_net_forward.1} parent=0 // pred_region
    _
  $region33: #{tab_net_forward.1} parent=0 // pred_fallthru
    _

</llo_original>
